<compile_context>
chip_gen: v7x
topology: tpu7x:2x2x1
jax: 0.10.0
libtpu: 0.0.40
codegen_flags: <defaults>
</compile_context>

<pallas_src>
import jax
import jax.numpy as jnp
from jax.experimental import pallas as pl
from jax.experimental.pallas import tpu as pltpu

HIDDEN_SIZE = 128
INPUT_SIZE = 60
NUM_LAYERS = 1
SEQ_LENGTH = 1
NUM_CLASSES = 2
MAX_BATCH_TILE = 128      # batch rows per grid step; weights stay VMEM-resident


def _lstm_kernel(x_ref, h0_ref, c0_ref, w_ih_ref, w_hh_ref, b_ref,
                 wfc_ref, bfc_ref, out_ref, h_out_ref, c_out_ref):
    """Fused LSTM (T static steps) + fc + 2-class log_softmax, one batch tile.

    Shapes (all VMEM-resident blocks):
      x_ref   : (TB, T, 60)  f32 input features (unpadded K)
      h0/c0   : (TB, H)      f32
      w_ih    : (60, 4H)     bf16  (= W_ih^T)
      w_hh    : (H, 4H)      bf16  (= W_hh^T)
      b_ref   : (1, 4H)      f32   (= b_ih + b_hh)
      wfc_ref : (2, H)       f32
      bfc_ref : (1, 2)       f32
      out_ref : (TB, 2)      f32 log-softmax
      h_out/c_out : (TB, H)  f32  (aliased onto h0/c0 HBM buffers)
    """
    H = h0_ref.shape[-1]
    T = x_ref.shape[1]

    # Recurrent state lives in registers; written back exactly once.
    h = h0_ref[...]
    c = c0_ref[...]

    # T is static (== 1 here); a static Python loop keeps full LLO visibility.
    for t in range(T):
        x_t = x_ref[:, t, :].astype(jnp.bfloat16)                    # (TB, 60)
        gates = (jnp.dot(x_t, w_ih_ref[...],
                         preferred_element_type=jnp.float32)
                 + jnp.dot(h.astype(jnp.bfloat16), w_hh_ref[...],
                           preferred_element_type=jnp.float32)
                 + b_ref[...])                                       # (TB, 4H) f32
        # PyTorch gate order: i, f, g, o
        i_g = jax.nn.sigmoid(gates[:, 0 * H:1 * H])
        f_g = jax.nn.sigmoid(gates[:, 1 * H:2 * H])
        g_g = jnp.tanh(gates[:, 2 * H:3 * H])
        o_g = jax.nn.sigmoid(gates[:, 3 * H:4 * H])
        c = f_g * c + i_g * g_g
        h = o_g * jnp.tanh(c)

    h_out_ref[...] = h
    c_out_ref[...] = c

    # fc(128 -> 2) as two lane reductions (XLU slot — essentially free here),
    # then an exact 2-class log-softmax (no padded lanes, no masked exp).
    logit0 = jnp.sum(h * wfc_ref[0:1, :], axis=-1, keepdims=True) + bfc_ref[:, 0:1]
    logit1 = jnp.sum(h * wfc_ref[1:2, :], axis=-1, keepdims=True) + bfc_ref[:, 1:2]
    m = jnp.maximum(logit0, logit1)
    z0 = logit0 - m
    z1 = logit1 - m
    lse = jnp.log(jnp.exp(z0) + jnp.exp(z1))
    out_ref[...] = jnp.concatenate([z0 - lse, z1 - lse], axis=-1)    # (TB, 2)


def prepare_params(params):
    """One-time weight packing (transpose, bias-fold, bf16 cast).

    Runs OUTSIDE the per-call jitted path so no per-call XLA transposes/casts.
    """
    H = HIDDEN_SIZE
    packed = {
        "w_ih": jnp.transpose(params["w_ih"]).astype(jnp.bfloat16),   # (60, 4H)
        "w_hh": jnp.transpose(params["w_hh"]).astype(jnp.bfloat16),   # (H, 4H)
        "b": (params["b_ih"] + params["b_hh"]).astype(jnp.float32).reshape(1, 4 * H),
        "w_fc": params["w_fc"].astype(jnp.float32),                   # (2, H)
        "b_fc": params["b_fc"].astype(jnp.float32).reshape(1, NUM_CLASSES),
    }
    return jax.tree_util.tree_map(jax.device_put, packed)


@jax.jit
def lstm_forward(x, h0, c0, packed):
    """x: (B, T, 60); h0, c0: (num_layers=1, B, 128). Returns (out, h_1, c_1)."""
    B, T, I = x.shape
    H = HIDDEN_SIZE
    TB = B if B <= MAX_BATCH_TILE else MAX_BATCH_TILE
    grid = (pl.cdiv(B, TB),)

    h0_2d = h0[0].astype(jnp.float32)        # (B, H) — no padding / DUS ops
    c0_2d = c0[0].astype(jnp.float32)

    flops = int(T * 2 * B * (I + H) * 4 * H + 2 * B * H * NUM_CLASSES)
    transcendentals = int(T * B * 5 * H + 3 * B)
    bytes_accessed = int(
        4 * x.size + 4 * 2 * B * H                      # x, h0, c0 in
        + 2 * (I + H) * 4 * H + 4 * 4 * H               # bf16 gate weights, f32 bias
        + 4 * (NUM_CLASSES * H + NUM_CLASSES)           # fc weight + bias
        + 4 * (B * NUM_CLASSES + 2 * B * H))            # outputs

    out, h_out, c_out = pl.pallas_call(
        _lstm_kernel,
        grid=grid,
        in_specs=[
            pl.BlockSpec((TB, T, I), lambda i: (i, 0, 0)),           # x
            pl.BlockSpec((TB, H), lambda i: (i, 0)),                 # h0
            pl.BlockSpec((TB, H), lambda i: (i, 0)),                 # c0
            pl.BlockSpec((I, 4 * H), lambda i: (0, 0)),              # W_ih^T (resident)
            pl.BlockSpec((H, 4 * H), lambda i: (0, 0)),              # W_hh^T (resident)
            pl.BlockSpec((1, 4 * H), lambda i: (0, 0)),              # bias
            pl.BlockSpec((NUM_CLASSES, H), lambda i: (0, 0)),        # fc weight
            pl.BlockSpec((1, NUM_CLASSES), lambda i: (0, 0)),        # fc bias
        ],
        out_specs=(
            pl.BlockSpec((TB, NUM_CLASSES), lambda i: (i, 0)),
            pl.BlockSpec((TB, H), lambda i: (i, 0)),
            pl.BlockSpec((TB, H), lambda i: (i, 0)),
        ),
        out_shape=(
            jax.ShapeDtypeStruct((B, NUM_CLASSES), jnp.float32),
            jax.ShapeDtypeStruct((B, H), jnp.float32),
            jax.ShapeDtypeStruct((B, H), jnp.float32),
        ),
        # h0 -> h_out, c0 -> c_out (same shape/dtype, read before written)
        input_output_aliases={1: 1, 2: 2},
        compiler_params=pltpu.CompilerParams(
            dimension_semantics=("parallel",)),
        cost_estimate=pl.CostEstimate(
            flops=flops,
            transcendentals=transcendentals,
            bytes_accessed=bytes_accessed),
    )(x, h0_2d, c0_2d, packed["w_ih"], packed["w_hh"], packed["b"],
      packed["w_fc"], packed["b_fc"])

    # Match PyTorch output shapes: out (B, 1, 2); h_1/c_1 (num_layers, B, H).
    return out.reshape(B, 1, NUM_CLASSES), h_out[None], c_out[None]


def init_params(key):
    """Deterministic init mirroring PyTorch's default U(-1/sqrt(H), 1/sqrt(H))."""
    H, I = HIDDEN_SIZE, INPUT_SIZE
    ks = jax.random.split(key, 6)
    bound = 1.0 / jnp.sqrt(H)
    return {
        "w_ih": jax.random.uniform(ks[0], (4 * H, I), jnp.float32, -bound, bound),
        "w_hh": jax.random.uniform(ks[1], (4 * H, H), jnp.float32, -bound, bound),
        "b_ih": jax.random.uniform(ks[2], (4 * H,), jnp.float32, -bound, bound),
        "b_hh": jax.random.uniform(ks[3], (4 * H,), jnp.float32, -bound, bound),
        "w_fc": jax.random.uniform(ks[4], (NUM_CLASSES, H), jnp.float32, -bound, bound),
        "b_fc": jax.random.uniform(ks[5], (NUM_CLASSES,), jnp.float32, -bound, bound),
    }


def _reference_forward(x, h0, c0, params):
    """Pure-JAX f32 reference implementing the same math (PyTorch semantics)."""
    H = HIDDEN_SIZE
    h = h0[0]
    c = c0[0]
    for t in range(x.shape[1]):
        gates = (x[:, t, :] @ params["w_ih"].T + params["b_ih"]
                 + h @ params["w_hh"].T + params["b_hh"])
        i_g = jax.nn.sigmoid(gates[:, 0 * H:1 * H])
        f_g = jax.nn.sigmoid(gates[:, 1 * H:2 * H])
        g_g = jnp.tanh(gates[:, 2 * H:3 * H])
        o_g = jax.nn.sigmoid(gates[:, 3 * H:4 * H])
        c = f_g * c + i_g * g_g
        h = o_g * jnp.tanh(c)
    logits = h @ params["w_fc"].T + params["b_fc"]
    out = jax.nn.log_softmax(logits, axis=-1)[:, None, :]
    return out, h[None], c[None]


if __name__ == "__main__":
    key = jax.random.PRNGKey(0)
    k_p, k_x = jax.random.split(key)

    params = init_params(k_p)
    packed = prepare_params(params)   # one-time layout prep, outside jit

    B = 2
    x = jax.random.normal(k_x, (B, SEQ_LENGTH, INPUT_SIZE), jnp.float32)
    h0 = jnp.zeros((NUM_LAYERS, B, HIDDEN_SIZE), jnp.float32)
    c0 = jnp.zeros((NUM_LAYERS, B, HIDDEN_SIZE), jnp.float32)

    out, h1, c1 = lstm_forward(x, h0, c0, packed)
    jax.block_until_ready((out, h1, c1))

    out_ref, h1_ref, c1_ref = _reference_forward(x, h0, c0, params)
    assert out.shape == (B, 1, NUM_CLASSES)
    assert h1.shape == (NUM_LAYERS, B, HIDDEN_SIZE)
    assert c1.shape == (NUM_LAYERS, B, HIDDEN_SIZE)
    # bf16 gate weights (f32 accumulation) -> relaxed tolerance vs f32 reference.
    assert jnp.allclose(out, out_ref, atol=2e-2, rtol=2e-2)
    assert jnp.allclose(h1, h1_ref, atol=2e-2, rtol=2e-2)
    assert jnp.allclose(c1, c1_ref, atol=2e-2, rtol=2e-2)

    print("KERNEL_OK")
</pallas_src>

<mosaic_0001>
module attributes {stable_mosaic.version = 11 : i64} {
  func.func @_lstm_kernel(%arg0: i32, %arg1: memref<2x1x60xf32, #tpu.memory_space<vmem>>, %arg2: memref<2x128xf32, #tpu.memory_space<vmem>>, %arg3: memref<2x128xf32, #tpu.memory_space<vmem>>, %arg4: memref<60x512xbf16, #tpu.memory_space<vmem>>, %arg5: memref<128x512xbf16, #tpu.memory_space<vmem>>, %arg6: memref<1x512xf32, #tpu.memory_space<vmem>>, %arg7: memref<2x128xf32, #tpu.memory_space<vmem>>, %arg8: memref<1x2xf32, #tpu.memory_space<vmem>>, %arg9: memref<2x2xf32, #tpu.memory_space<vmem>>, %arg10: memref<2x128xf32, #tpu.memory_space<vmem>>, %arg11: memref<2x128xf32, #tpu.memory_space<vmem>>) attributes {dimension_semantics = [#tpu.dimension_semantics<parallel>], iteration_bounds = array<i64: 1>, scalar_prefetch = 0 : i64, scratch_operands = 0 : i64, tpu.core_type = #tpu.core_type<tc>, window_params = [{transform_indices = @transform_0, window_bounds = array<i64: 2, 1, 60>}, {transform_indices = @transform_1, window_bounds = array<i64: 2, 128>}, {transform_indices = @transform_2, window_bounds = array<i64: 2, 128>}, {pipeline_mode = #tpu.pipeline_mode<synchronous>, transform_indices = @transform_3, window_bounds = array<i64: 60, 512>}, {pipeline_mode = #tpu.pipeline_mode<synchronous>, transform_indices = @transform_4, window_bounds = array<i64: 128, 512>}, {pipeline_mode = #tpu.pipeline_mode<synchronous>, transform_indices = @transform_5, window_bounds = array<i64: 1, 512>}, {pipeline_mode = #tpu.pipeline_mode<synchronous>, transform_indices = @transform_6, window_bounds = array<i64: 2, 128>}, {pipeline_mode = #tpu.pipeline_mode<synchronous>, transform_indices = @transform_7, window_bounds = array<i64: 1, 2>}, {transform_indices = @transform_8, window_bounds = array<i64: 2, 2>}, {transform_indices = @transform_9, window_bounds = array<i64: 2, 128>}, {transform_indices = @transform_10, window_bounds = array<i64: 2, 128>}]} {
    %c0 = arith.constant 0 : index
    %c0_0 = arith.constant 0 : index
    %0 = vector.load %arg2[%c0, %c0_0] : memref<2x128xf32, #tpu.memory_space<vmem>>, vector<2x128xf32>
    %c0_1 = arith.constant 0 : index
    %c0_2 = arith.constant 0 : index
    %1 = vector.load %arg3[%c0_1, %c0_2] : memref<2x128xf32, #tpu.memory_space<vmem>>, vector<2x128xf32>
    %c0_3 = arith.constant 0 : index
    %c0_4 = arith.constant 0 : index
    %c0_5 = arith.constant 0 : index
    %2 = vector.load %arg1[%c0_3, %c0_4, %c0_5] : memref<2x1x60xf32, #tpu.memory_space<vmem>>, vector<2x1x60xf32>
    %3 = vector.shape_cast %2 : vector<2x1x60xf32> to vector<2x60xf32>
    %4 = arith.truncf %3 : vector<2x60xf32> to vector<2x60xbf16>
    %c0_6 = arith.constant 0 : index
    %c0_7 = arith.constant 0 : index
    %5 = vector.load %arg4[%c0_6, %c0_7] : memref<60x512xbf16, #tpu.memory_space<vmem>>, vector<60x512xbf16>
    %cst = arith.constant dense<0.000000e+00> : vector<2x512xf32>
    %6 = tpu.matmul %4, %5, %cst {dimension_numbers = #tpu.dot_dimension_numbers<[1], [0], [0], [1], [0, 0, 1, 1], [], []>} : vector<2x60xbf16>, vector<60x512xbf16>, vector<2x512xf32> -> vector<2x512xf32>
    %7 = arith.truncf %0 : vector<2x128xf32> to vector<2x128xbf16>
    %c0_8 = arith.constant 0 : index
    %c0_9 = arith.constant 0 : index
    %8 = vector.load %arg5[%c0_8, %c0_9] : memref<128x512xbf16, #tpu.memory_space<vmem>>, vector<128x512xbf16>
    %cst_10 = arith.constant dense<0.000000e+00> : vector<2x512xf32>
    %9 = tpu.matmul %7, %8, %cst_10 {dimension_numbers = #tpu.dot_dimension_numbers<[1], [0], [0], [1], [0, 0, 1, 1], [], []>} : vector<2x128xbf16>, vector<128x512xbf16>, vector<2x512xf32> -> vector<2x512xf32>
    %10 = arith.addf %6, %9 : vector<2x512xf32>
    %c0_11 = arith.constant 0 : index
    %c0_12 = arith.constant 0 : index
    %11 = vector.load %arg6[%c0_11, %c0_12] : memref<1x512xf32, #tpu.memory_space<vmem>>, vector<1x512xf32>
    %12 = vector.broadcast %11 : vector<1x512xf32> to vector<2x512xf32>
    %13 = arith.addf %10, %12 : vector<2x512xf32>
    %14 = vector.extract_strided_slice %13 {offsets = [0, 0], sizes = [2, 128], strides = [1, 1]} : vector<2x512xf32> to vector<2x128xf32>
    %15 = arith.negf %14 : vector<2x128xf32>
    %16 = math.exp %15 : vector<2x128xf32>
    %cst_13 = arith.constant 1.000000e+00 : f32
    %17 = vector.broadcast %cst_13 : f32 to vector<2x128xf32>
    %18 = arith.addf %17, %16 : vector<2x128xf32>
    %19 = arith.divf %17, %18 : vector<2x128xf32>
    %20 = vector.extract_strided_slice %13 {offsets = [0, 128], sizes = [2, 128], strides = [1, 1]} : vector<2x512xf32> to vector<2x128xf32>
    %21 = arith.negf %20 : vector<2x128xf32>
    %22 = math.exp %21 : vector<2x128xf32>
    %cst_14 = arith.constant 1.000000e+00 : f32
    %23 = vector.broadcast %cst_14 : f32 to vector<2x128xf32>
    %24 = arith.addf %23, %22 : vector<2x128xf32>
    %25 = arith.divf %23, %24 : vector<2x128xf32>
    %26 = vector.extract_strided_slice %13 {offsets = [0, 256], sizes = [2, 128], strides = [1, 1]} : vector<2x512xf32> to vector<2x128xf32>
    %27 = math.tanh %26 : vector<2x128xf32>
    %28 = vector.extract_strided_slice %13 {offsets = [0, 384], sizes = [2, 128], strides = [1, 1]} : vector<2x512xf32> to vector<2x128xf32>
    %29 = arith.negf %28 : vector<2x128xf32>
    %30 = math.exp %29 : vector<2x128xf32>
    %cst_15 = arith.constant 1.000000e+00 : f32
    %31 = vector.broadcast %cst_15 : f32 to vector<2x128xf32>
    %32 = arith.addf %31, %30 : vector<2x128xf32>
    %33 = arith.divf %31, %32 : vector<2x128xf32>
    %34 = arith.mulf %25, %1 : vector<2x128xf32>
    %35 = arith.mulf %19, %27 : vector<2x128xf32>
    %36 = arith.addf %34, %35 : vector<2x128xf32>
    %37 = math.tanh %36 : vector<2x128xf32>
    %38 = arith.mulf %33, %37 : vector<2x128xf32>
    %c0_16 = arith.constant 0 : index
    %c0_17 = arith.constant 0 : index
    %39 = vector.load %arg10[%c0_16, %c0_17] : memref<2x128xf32, #tpu.memory_space<vmem>>, vector<2x128xf32>
    tpu.vector_store %arg10[%c0_16, %c0_17], %38 {strides = array<i32>} : memref<2x128xf32, #tpu.memory_space<vmem>>, vector<2x128xf32>,
    %c0_18 = arith.constant 0 : index
    %c0_19 = arith.constant 0 : index
    %40 = vector.load %arg11[%c0_18, %c0_19] : memref<2x128xf32, #tpu.memory_space<vmem>>, vector<2x128xf32>
    tpu.vector_store %arg11[%c0_18, %c0_19], %36 {strides = array<i32>} : memref<2x128xf32, #tpu.memory_space<vmem>>, vector<2x128xf32>,
    %c0_20 = arith.constant 0 : index
    %c0_21 = arith.constant 0 : index
    %41 = vector.load %arg7[%c0_20, %c0_21] : memref<2x128xf32, #tpu.memory_space<vmem>>, vector<1x128xf32>
    %42 = vector.broadcast %41 : vector<1x128xf32> to vector<2x128xf32>
    %43 = arith.mulf %38, %42 : vector<2x128xf32>
    %cst_22 = arith.constant dense<0.000000e+00> : vector<2xf32>
    %44 = vector.multi_reduction <add>, %43, %cst_22 [1] : vector<2x128xf32> to vector<2xf32>
    %45 = vector.shape_cast %44 : vector<2xf32> to vector<2x1xf32>
    %c0_23 = arith.constant 0 : index
    %c0_24 = arith.constant 0 : index
    %46 = vector.load %arg8[%c0_23, %c0_24] : memref<1x2xf32, #tpu.memory_space<vmem>>, vector<1x1xf32>
    %47 = vector.broadcast %46 : vector<1x1xf32> to vector<2x1xf32>
    %48 = arith.addf %45, %47 : vector<2x1xf32>
    %c1 = arith.constant 1 : index
    %c0_25 = arith.constant 0 : index
    %49 = vector.load %arg7[%c1, %c0_25] : memref<2x128xf32, #tpu.memory_space<vmem>>, vector<1x128xf32>
    %50 = vector.broadcast %49 : vector<1x128xf32> to vector<2x128xf32>
    %51 = arith.mulf %38, %50 : vector<2x128xf32>
    %cst_26 = arith.constant dense<0.000000e+00> : vector<2xf32>
    %52 = vector.multi_reduction <add>, %51, %cst_26 [1] : vector<2x128xf32> to vector<2xf32>
    %53 = vector.shape_cast %52 : vector<2xf32> to vector<2x1xf32>
    %c0_27 = arith.constant 0 : index
    %c1_28 = arith.constant 1 : index
    %54 = vector.load %arg8[%c0_27, %c1_28] : memref<1x2xf32, #tpu.memory_space<vmem>>, vector<1x1xf32>
    %55 = vector.broadcast %54 : vector<1x1xf32> to vector<2x1xf32>
    %56 = arith.addf %53, %55 : vector<2x1xf32>
    %57 = arith.maximumf %48, %56 : vector<2x1xf32>
    %58 = arith.subf %48, %57 : vector<2x1xf32>
    %59 = arith.subf %56, %57 : vector<2x1xf32>
    %60 = math.exp %58 : vector<2x1xf32>
    %61 = math.exp %59 : vector<2x1xf32>
    %62 = arith.addf %60, %61 : vector<2x1xf32>
    %63 = math.log %62 : vector<2x1xf32>
    %64 = arith.subf %58, %63 : vector<2x1xf32>
    %65 = arith.subf %59, %63 : vector<2x1xf32>
    %66 = tpu.concatenate %64, %65 in 1 : vector<2x1xf32>, vector<2x1xf32> -> vector<2x2xf32>
    %c0_29 = arith.constant 0 : index
    %c0_30 = arith.constant 0 : index
    %67 = vector.load %arg9[%c0_29, %c0_30] : memref<2x2xf32, #tpu.memory_space<vmem>>, vector<2x2xf32>
    tpu.vector_store %arg9[%c0_29, %c0_30], %66 {strides = array<i32>} : memref<2x2xf32, #tpu.memory_space<vmem>>, vector<2x2xf32>,
    return
  }
  func.func @transform_0(%arg0: i32) -> (i32, i32, i32) {
    %c0_i32 = arith.constant 0 : i32
    %c0_i32_0 = arith.constant 0 : i32
    %c0_i32_1 = arith.constant 0 : i32
    return %arg0, %c0_i32, %c0_i32_0 : i32, i32, i32
  }
  func.func @transform_1(%arg0: i32) -> (i32, i32) {
    %c0_i32 = arith.constant 0 : i32
    %c0_i32_0 = arith.constant 0 : i32
    return %arg0, %c0_i32 : i32, i32
  }
  func.func @transform_2(%arg0: i32) -> (i32, i32) {
    %c0_i32 = arith.constant 0 : i32
    %c0_i32_0 = arith.constant 0 : i32
    return %arg0, %c0_i32 : i32, i32
  }
  func.func @transform_3(%arg0: i32) -> (i32, i32) {
    %c0_i32 = arith.constant 0 : i32
    %c0_i32_0 = arith.constant 0 : i32
    %c0_i32_1 = arith.constant 0 : i32
    return %c0_i32, %c0_i32_0 : i32, i32
  }
  func.func @transform_4(%arg0: i32) -> (i32, i32) {
    %c0_i32 = arith.constant 0 : i32
    %c0_i32_0 = arith.constant 0 : i32
    %c0_i32_1 = arith.constant 0 : i32
    return %c0_i32, %c0_i32_0 : i32, i32
  }
  func.func @transform_5(%arg0: i32) -> (i32, i32) {
    %c0_i32 = arith.constant 0 : i32
    %c0_i32_0 = arith.constant 0 : i32
    %c0_i32_1 = arith.constant 0 : i32
    return %c0_i32, %c0_i32_0 : i32, i32
  }
  func.func @transform_6(%arg0: i32) -> (i32, i32) {
    %c0_i32 = arith.constant 0 : i32
    %c0_i32_0 = arith.constant 0 : i32
    %c0_i32_1 = arith.constant 0 : i32
    return %c0_i32, %c0_i32_0 : i32, i32
  }
  func.func @transform_7(%arg0: i32) -> (i32, i32) {
    %c0_i32 = arith.constant 0 : i32
    %c0_i32_0 = arith.constant 0 : i32
    %c0_i32_1 = arith.constant 0 : i32
    return %c0_i32, %c0_i32_0 : i32, i32
  }
  func.func @transform_8(%arg0: i32) -> (i32, i32) {
    %c0_i32 = arith.constant 0 : i32
    %c0_i32_0 = arith.constant 0 : i32
    return %arg0, %c0_i32 : i32, i32
  }
  func.func @transform_9(%arg0: i32) -> (i32, i32) {
    %c0_i32 = arith.constant 0 : i32
    %c0_i32_0 = arith.constant 0 : i32
    return %arg0, %c0_i32 : i32, i32
  }
  func.func @transform_10(%arg0: i32) -> (i32, i32) {
    %c0_i32 = arith.constant 0 : i32
    %c0_i32_0 = arith.constant 0 : i32
    return %arg0, %c0_i32 : i32, i32
  }
}

</mosaic_0001>

<llo_original>
// kernel: lstm_forward.1
$region0: #{lstm_forward.1}
  #allocation0 [shape = 'u32[]', space=smem, size = 0x4, offset = 0x4, fixed_abs, tag = 'smem constant byte address 0x4 - core index']
  #allocation1 [shape = 'u32[144,128]{1,0:T(1,128)}', space=vmem, size = 0x12000, scoped, tag = 'internal scratch']
  %s0 = inlined_call_operand.vmem [shape: f32[2,1,60], index: 0, kind: input, shape index: {}]
  %s1 = inlined_call_operand.vmem [shape: f32[2,128], index: 1, kind: input, shape index: {}, may-alias: {1,9}]
  %s2 = inlined_call_operand.vmem [shape: f32[2,128], index: 2, kind: input, shape index: {}, may-alias: {2,10}]
  %s3 = inlined_call_operand.hbm [shape: bf16[60,512], index: 3, kind: input, shape index: {}]
  %s4 = inlined_call_operand.hbm [shape: bf16[128,512], index: 4, kind: input, shape index: {}]
  %s5 = inlined_call_operand.vmem [shape: f32[1,512], index: 5, kind: input, shape index: {}]
  %s6 = inlined_call_operand.vmem [shape: f32[2,128], index: 6, kind: input, shape index: {}]
  %s7 = inlined_call_operand.vmem [shape: f32[1,2], index: 7, kind: input, shape index: {}]
  %s8 = inlined_call_operand.hbm [shape: f32[2,2], index: 8, kind: output, shape index: {0}]
  %s9 = inlined_call_operand.vmem [shape: f32[2,128], index: 9, kind: output, shape index: {1}, may-alias: {1,9}]
  %s10 = inlined_call_operand.vmem [shape: f32[2,128], index: 10, kind: output, shape index: {2}, may-alias: {2,10}]
  %11 = xla_tuple %s8, %s9, %s10
  %s12 = sld [smem:[#allocation0]]
  $region66: #{lstm_forward.1} parent=0
    _
  %s14 = ssub.s32 1, %s12
  %s15 = scalar_select 0, %s14, %s12
  $region1: #{lstm_forward.1} parent=0
    #allocation2 [shape = 'u8[65536]{0}', space=vmem, size = 0x10000, scoped, tag = 'input window, operand 3, single buffered']
    #allocation3 [shape = 's32[1]{0}', space=sflag, size = 0x4, scoped, tag = 'scoped memory for lstm_forward.1']
    #allocation4 [shape = 's32[1]{0}', space=sflag, size = 0x4, scoped, tag = 'scoped memory for lstm_forward.1']
    #allocation5 [shape = 'u8[131072]{0}', space=vmem, size = 0x20000, scoped, tag = 'input window, operand 4, single buffered']
    #allocation6 [shape = 's32[1]{0}', space=sflag, size = 0x4, scoped, tag = 'scoped memory for lstm_forward.1']
    #allocation7 [shape = 'u8[1024]{0}', space=vmem, size = 0x400, scoped, tag = 'output window, operand 0, single buffered']
    %16 = vsyncpa [#allocation3], 0
    %17 = vsyncpa [#allocation6], 0
    %18 = vsyncpa [#allocation4], 0
    // Predicated region
    $region2: #{lstm_forward.1} parent=1 // pred_check
      _
    $region3: #{lstm_forward.1} parent=1 // pred_check_branch
      %20 = sbr.rel (0) target = $region5
    $region4: #{lstm_forward.1} parent=1 // pred_region
      _
    $region5: #{lstm_forward.1} parent=1 // pred_fallthru
      _
    // Predicated region
    $region6: #{lstm_forward.1} parent=1 // pred_check
      _
    $region7: #{lstm_forward.1} parent=1 // pred_check_branch
      %22 = sbr.rel (0) target = $region9
    $region8: #{lstm_forward.1} parent=1 // pred_region
      _
    $region9: #{lstm_forward.1} parent=1 // pred_fallthru
      _
    // Predicated region
    $region10: #{lstm_forward.1} parent=1 // pred_check
      _
    $region11: #{lstm_forward.1} parent=1 // pred_check_branch
      %24 = sbr.rel (0) target = $region13
    $region12: #{lstm_forward.1} parent=1 // pred_region
      _
    $region13: #{lstm_forward.1} parent=1 // pred_fallthru
      _
    // Predicated region
    $region14: #{lstm_forward.1} parent=1 // pred_check
      _
    $region15: #{lstm_forward.1} parent=1 // pred_check_branch
      %26 = sbr.rel (0) target = $region17
    $region16: #{lstm_forward.1} parent=1 // pred_region
      %s28 = ssub.s32 2048, 2048
      %29 = vsyncadd [#allocation3], %s28
      %s30 = sshll.u32 [#allocation2], 4
      %s31 = int_to_ptr.vmem [resolvable:$true] %s30
      %36 = dma.hbm_to_vmem [thread:$0]  %s3, 2048, %s31, [#allocation3], 256, 256, 16
    $region17: #{lstm_forward.1} parent=1 // pred_fallthru
      _
    // Predicated region
    $region18: #{lstm_forward.1} parent=1 // pred_check
      _
    $region19: #{lstm_forward.1} parent=1 // pred_check_branch
      %38 = sbr.rel (0) target = $region21
    $region20: #{lstm_forward.1} parent=1 // pred_region
      %s40 = ssub.s32 4096, 4096
      %41 = vsyncadd [#allocation6], %s40
      %s42 = sshll.u32 [#allocation5], 4
      %s43 = int_to_ptr.vmem [resolvable:$true] %s42
      %48 = dma.hbm_to_vmem [thread:$0]  %s4, 4096, %s43, [#allocation6], 256, 256, 16
    $region21: #{lstm_forward.1} parent=1 // pred_fallthru
      _
    // Predicated region
    $region22: #{lstm_forward.1} parent=1 // pred_check
      _
    $region23: #{lstm_forward.1} parent=1 // pred_check_branch
      %50 = sbr.rel (0) target = $region25
    $region24: #{lstm_forward.1} parent=1 // pred_region
      _
    $region25: #{lstm_forward.1} parent=1 // pred_fallthru
      _
    // Predicated region
    $region26: #{lstm_forward.1} parent=1 // pred_check
      _
    $region27: #{lstm_forward.1} parent=1 // pred_check_branch
      %52 = sbr.rel (0) target = $region29
    $region28: #{lstm_forward.1} parent=1 // pred_region
      _
    $region29: #{lstm_forward.1} parent=1 // pred_fallthru
      _
    // Predicated region
    $region30: #{lstm_forward.1} parent=1 // pred_check
      _
    $region31: #{lstm_forward.1} parent=1 // pred_check_branch
      %54 = sbr.rel (0) target = $region33
    $region32: #{lstm_forward.1} parent=1 // pred_region
      _
    $region33: #{lstm_forward.1} parent=1 // pred_fallthru
      _
    // Predicated region
    $region34: #{lstm_forward.1} parent=1 // pred_check
      _
    $region35: #{lstm_forward.1} parent=1 // pred_check_branch
      %56 = sbr.rel (0) target = $region37
    $region36: #{lstm_forward.1} parent=1 // pred_region
      %57 = dma.done [#allocation3], 2048
    $region37: #{lstm_forward.1} parent=1 // pred_fallthru
      _
    // Predicated region
    $region38: #{lstm_forward.1} parent=1 // pred_check
      _
    $region39: #{lstm_forward.1} parent=1 // pred_check_branch
      %59 = sbr.rel (0) target = $region41
    $region40: #{lstm_forward.1} parent=1 // pred_region
      %60 = dma.done [#allocation6], 4096
    $region41: #{lstm_forward.1} parent=1 // pred_fallthru
      _
    %v62 = vld [vmem:[%s1] sm:$0x3]
    %v63 = vld [vmem:[%s2] sm:$0x3]
    %v64 = vld [vmem:[%s0] sm:$0x1]
    %v65 = vld [vmem:[%s0 + $0x1] sm:$0x1]
    %v66 = vpack.c.bf16 %v64, %v64
    %v67 = vpack.c.bf16 %v65, %v65
    %v68 = vld [vmem:[#allocation2] sm:$0xff]
    %v69 = vld [vmem:[#allocation2 + $0x8] sm:$0xff]
    %v70 = vld [vmem:[#allocation2 + $0x10] sm:$0xff]
    %v71 = vld [vmem:[#allocation2 + $0x18] sm:$0xff]
    %v72 = vld [vmem:[#allocation2 + $0x20] sm:$0xff]
    %v73 = vld [vmem:[#allocation2 + $0x28] sm:$0xff]
    %v74 = vld [vmem:[#allocation2 + $0x30] sm:$0xff]
    %v75 = vld [vmem:[#allocation2 + $0x38] sm:$0xff]
    %v76 = vld [vmem:[#allocation2 + $0x40] sm:$0xff]
    %v77 = vld [vmem:[#allocation2 + $0x48] sm:$0xff]
    %v78 = vld [vmem:[#allocation2 + $0x50] sm:$0xff]
    %v79 = vld [vmem:[#allocation2 + $0x58] sm:$0xff]
    %v80 = vld [vmem:[#allocation2 + $0x60] sm:$0xff]
    %v81 = vld [vmem:[#allocation2 + $0x68] sm:$0xff]
    %v82 = vld [vmem:[#allocation2 + $0x70] sm:$0x33]
    %v83 = vld [vmem:[#allocation2 + $0x78] sm:$0x33]
    %v84 = vpack.c.bf16 %v62, %v62
    %v85 = vld [vmem:[#allocation5] sm:$0xff]
    %v86 = vld [vmem:[#allocation5 + $0x8] sm:$0xff]
    %v87 = vld [vmem:[#allocation5 + $0x10] sm:$0xff]
    %v88 = vld [vmem:[#allocation5 + $0x18] sm:$0xff]
    %v89 = vld [vmem:[#allocation5 + $0x20] sm:$0xff]
    %v90 = vld [vmem:[#allocation5 + $0x28] sm:$0xff]
    %v91 = vld [vmem:[#allocation5 + $0x30] sm:$0xff]
    %v92 = vld [vmem:[#allocation5 + $0x38] sm:$0xff]
    %v93 = vld [vmem:[#allocation5 + $0x40] sm:$0xff]
    %v94 = vld [vmem:[#allocation5 + $0x48] sm:$0xff]
    %v95 = vld [vmem:[#allocation5 + $0x50] sm:$0xff]
    %v96 = vld [vmem:[#allocation5 + $0x58] sm:$0xff]
    %v97 = vld [vmem:[#allocation5 + $0x60] sm:$0xff]
    %v98 = vld [vmem:[#allocation5 + $0x68] sm:$0xff]
    %v99 = vld [vmem:[#allocation5 + $0x70] sm:$0xff]
    %v100 = vld [vmem:[#allocation5 + $0x78] sm:$0xff]
    %v101 = vld [vmem:[#allocation5 + $0x80] sm:$0xff]
    %v102 = vld [vmem:[#allocation5 + $0x88] sm:$0xff]
    %v103 = vld [vmem:[#allocation5 + $0x90] sm:$0xff]
    %v104 = vld [vmem:[#allocation5 + $0x98] sm:$0xff]
    %v105 = vld [vmem:[#allocation5 + $0xa0] sm:$0xff]
    %v106 = vld [vmem:[#allocation5 + $0xa8] sm:$0xff]
    %v107 = vld [vmem:[#allocation5 + $0xb0] sm:$0xff]
    %v108 = vld [vmem:[#allocation5 + $0xb8] sm:$0xff]
    %v109 = vld [vmem:[#allocation5 + $0xc0] sm:$0xff]
    %v110 = vld [vmem:[#allocation5 + $0xc8] sm:$0xff]
    %v111 = vld [vmem:[#allocation5 + $0xd0] sm:$0xff]
    %v112 = vld [vmem:[#allocation5 + $0xd8] sm:$0xff]
    %v113 = vld [vmem:[#allocation5 + $0xe0] sm:$0xff]
    %v114 = vld [vmem:[#allocation5 + $0xe8] sm:$0xff]
    %v115 = vld [vmem:[#allocation5 + $0xf0] sm:$0xff]
    %v116 = vld [vmem:[#allocation5 + $0xf8] sm:$0xff]
    %v149 = vunpack.c.l.b16 %v85
    %v150 = vunpack.c.h.b16 %v85
    %v151 = vunpack.c.l.b16 %v86
    %v152 = vunpack.c.h.b16 %v86
    %v153 = vunpack.c.l.b16 %v87
    %v154 = vunpack.c.h.b16 %v87
    %v155 = vunpack.c.l.b16 %v88
    %v156 = vunpack.c.h.b16 %v88
    %v157 = vunpack.c.l.b16 %v89
    %v158 = vunpack.c.h.b16 %v89
    %v159 = vunpack.c.l.b16 %v90
    %v160 = vunpack.c.h.b16 %v90
    %v161 = vunpack.c.l.b16 %v91
    %v162 = vunpack.c.h.b16 %v91
    %v163 = vunpack.c.l.b16 %v92
    %v164 = vunpack.c.h.b16 %v92
    %v165 = vunpack.c.l.b16 %v93
    %v166 = vunpack.c.h.b16 %v93
    %v167 = vunpack.c.l.b16 %v94
    %v168 = vunpack.c.h.b16 %v94
    %v169 = vunpack.c.l.b16 %v95
    %v170 = vunpack.c.h.b16 %v95
    %v171 = vunpack.c.l.b16 %v96
    %v172 = vunpack.c.h.b16 %v96
    %v173 = vunpack.c.l.b16 %v97
    %v174 = vunpack.c.h.b16 %v97
    %v175 = vunpack.c.l.b16 %v98
    %v176 = vunpack.c.h.b16 %v98
    %v177 = vunpack.c.l.b16 %v99
    %v178 = vunpack.c.h.b16 %v99
    %v179 = vunpack.c.l.b16 %v100
    %v180 = vunpack.c.h.b16 %v100
    %v181 = vunpack.c.l.b16 %v101
    %v182 = vunpack.c.h.b16 %v101
    %v183 = vunpack.c.l.b16 %v102
    %v184 = vunpack.c.h.b16 %v102
    %v185 = vunpack.c.l.b16 %v103
    %v186 = vunpack.c.h.b16 %v103
    %v187 = vunpack.c.l.b16 %v104
    %v188 = vunpack.c.h.b16 %v104
    %v189 = vunpack.c.l.b16 %v105
    %v190 = vunpack.c.h.b16 %v105
    %v191 = vunpack.c.l.b16 %v106
    %v192 = vunpack.c.h.b16 %v106
    %v193 = vunpack.c.l.b16 %v107
    %v194 = vunpack.c.h.b16 %v107
    %v195 = vunpack.c.l.b16 %v108
    %v196 = vunpack.c.h.b16 %v108
    %v197 = vunpack.c.l.b16 %v109
    %v198 = vunpack.c.h.b16 %v109
    %v199 = vunpack.c.l.b16 %v110
    %v200 = vunpack.c.h.b16 %v110
    %v201 = vunpack.c.l.b16 %v111
    %v202 = vunpack.c.h.b16 %v111
    %v203 = vunpack.c.l.b16 %v112
    %v204 = vunpack.c.h.b16 %v112
    %v205 = vunpack.c.l.b16 %v113
    %v206 = vunpack.c.h.b16 %v113
    %v207 = vunpack.c.l.b16 %v114
    %v208 = vunpack.c.h.b16 %v114
    %v209 = vunpack.c.l.b16 %v115
    %v210 = vunpack.c.h.b16 %v115
    %v211 = vunpack.c.l.b16 %v116
    %v212 = vunpack.c.h.b16 %v116
    %v213 = vpack.c.b16 %v153, %v149
    %v214 = vpack.c.b16 %v154, %v150
    %v215 = vpack.c.b16 %v155, %v151
    %v216 = vpack.c.b16 %v156, %v152
    %v217 = vpack.c.b16 %v161, %v157
    %v218 = vpack.c.b16 %v162, %v158
    %v219 = vpack.c.b16 %v163, %v159
    %v220 = vpack.c.b16 %v164, %v160
    %v221 = vpack.c.b16 %v169, %v165
    %v222 = vpack.c.b16 %v170, %v166
    %v223 = vpack.c.b16 %v171, %v167
    %v224 = vpack.c.b16 %v172, %v168
    %v225 = vpack.c.b16 %v177, %v173
    %v226 = vpack.c.b16 %v178, %v174
    %v227 = vpack.c.b16 %v179, %v175
    %v228 = vpack.c.b16 %v180, %v176
    %v229 = vpack.c.b16 %v185, %v181
    %v230 = vpack.c.b16 %v186, %v182
    %v231 = vpack.c.b16 %v187, %v183
    %v232 = vpack.c.b16 %v188, %v184
    %v233 = vpack.c.b16 %v193, %v189
    %v234 = vpack.c.b16 %v194, %v190
    %v235 = vpack.c.b16 %v195, %v191
    %v236 = vpack.c.b16 %v196, %v192
    %v237 = vpack.c.b16 %v201, %v197
    %v238 = vpack.c.b16 %v202, %v198
    %v239 = vpack.c.b16 %v203, %v199
    %v240 = vpack.c.b16 %v204, %v200
    %v241 = vpack.c.b16 %v209, %v205
    %v242 = vpack.c.b16 %v210, %v206
    %v243 = vpack.c.b16 %v211, %v207
    %v244 = vpack.c.b16 %v212, %v208
    %277 = vmatprep.subr.bf16.mxu0 %v214
    %278 = vmatpush1.bf16.msra.mxu0 %v213
    %279 = vmatprep.subr.bf16.mxu0 %v218
    %280 = vmatpush1.bf16.msra.mxu0 %v217
    %281 = vmatprep.subr.bf16.mxu0 %v222
    %282 = vmatpush1.bf16.msra.mxu0 %v221
    %283 = vmatprep.subr.bf16.mxu0 %v226
    %284 = vmatpush1.bf16.msra.mxu0 %v225
    %285 = vmatprep.subr.bf16.mxu0 %v230
    %286 = vmatpush1.bf16.msra.mxu0 %v229
    %287 = vmatprep.subr.bf16.mxu0 %v234
    %288 = vmatpush1.bf16.msra.mxu0 %v233
    %289 = vmatprep.subr.bf16.mxu0 %v238
    %290 = vmatpush1.bf16.msra.mxu0 %v237
    %291 = vmatprep.subr.bf16.mxu0 %v242
    %292 = vmatpush1.bf16.msra.mxu0 %v241
    %293 = vmatprep.subr.bf16.mxu0 0
    %294 = vmatpush1.bf16.msra.mxu0 0
    %295 = vmatprep.subr.bf16.mxu0 0
    %296 = vmatpush1.bf16.msra.mxu0 0
    %297 = vmatprep.subr.bf16.mxu0 0
    %298 = vmatpush1.bf16.msra.mxu0 0
    %299 = vmatprep.subr.bf16.mxu0 0
    %300 = vmatpush1.bf16.msra.mxu0 0
    %301 = vmatprep.subr.bf16.mxu0 0
    %302 = vmatpush1.bf16.msra.mxu0 0
    %303 = vmatprep.subr.bf16.mxu0 0
    %304 = vmatpush1.bf16.msra.mxu0 0
    %305 = vmatprep.subr.bf16.mxu0 0
    %306 = vmatpush1.bf16.msra.mxu0 0
    %307 = vmatprep.subr.bf16.mxu0 0
    %308 = vmatpush1.bf16.msra.mxu0 0
    %309 = vmatprep.mubr.bf16.mxu0 0
    %310 = vmatmul.mubr.bf16.gmra.mrb[0].mxu0 %v84
    %v311 = vpop.f32.mrb[0].mxu0
    %v312 = vadd.f32 0.0, %v311
    %v313 = vpop.f32.mrb[0].mxu0
    %v314 = vadd.f32 0.0, %v313
    %v315 = vpop.f32.mrb[0].mxu0
    %v316 = vpop.f32.mrb[0].mxu0
    %317 = vdwg.mxu0
    %318 = vmatprep.subr.bf16.mxu0 %v216
    %319 = vmatpush1.bf16.msra.mxu0 %v215
    %320 = vmatprep.subr.bf16.mxu0 %v220
    %321 = vmatpush1.bf16.msra.mxu0 %v219
    %322 = vmatprep.subr.bf16.mxu0 %v224
    %323 = vmatpush1.bf16.msra.mxu0 %v223
    %324 = vmatprep.subr.bf16.mxu0 %v228
    %325 = vmatpush1.bf16.msra.mxu0 %v227
    %326 = vmatprep.subr.bf16.mxu0 %v232
    %327 = vmatpush1.bf16.msra.mxu0 %v231
    %328 = vmatprep.subr.bf16.mxu0 %v236
    %329 = vmatpush1.bf16.msra.mxu0 %v235
    %330 = vmatprep.subr.bf16.mxu0 %v240
    %331 = vmatpush1.bf16.msra.mxu0 %v239
    %332 = vmatprep.subr.bf16.mxu0 %v244
    %333 = vmatpush1.bf16.msra.mxu0 %v243
    %334 = vmatprep.subr.bf16.mxu0 0
    %335 = vmatpush1.bf16.msra.mxu0 0
    %336 = vmatprep.subr.bf16.mxu0 0
    %337 = vmatpush1.bf16.msra.mxu0 0
    %338 = vmatprep.subr.bf16.mxu0 0
    %339 = vmatpush1.bf16.msra.mxu0 0
    %340 = vmatprep.subr.bf16.mxu0 0
    %341 = vmatpush1.bf16.msra.mxu0 0
    %342 = vmatprep.subr.bf16.mxu0 0
    %343 = vmatpush1.bf16.msra.mxu0 0
    %344 = vmatprep.subr.bf16.mxu0 0
    %345 = vmatpush1.bf16.msra.mxu0 0
    %346 = vmatprep.subr.bf16.mxu0 0
    %347 = vmatpush1.bf16.msra.mxu0 0
    %348 = vmatprep.subr.bf16.mxu0 0
    %349 = vmatpush1.bf16.msra.mxu0 0
    %350 = vmatprep.mubr.bf16.mxu0 0
    %351 = vmatmul.mubr.bf16.gmra.mrb[0].mxu0 %v84
    %v352 = vpop.f32.mrb[0].mxu0
    %v353 = vadd.f32 0.0, %v352
    %v354 = vpop.f32.mrb[0].mxu0
    %v355 = vadd.f32 0.0, %v354
    %v356 = vpop.f32.mrb[0].mxu0
    %v357 = vpop.f32.mrb[0].mxu0
    %358 = vdwg.mxu0
    %v361 = vunpack.c.l.b16 %v66
    %v362 = vunpack.c.l.b16 %v67
    %v363 = vrot.slane %v362, 7
    %vm364 = vcmask 1041409
    %v365 = vsel %vm364, %v363, %v361
    %v366 = vpack.c.b16 %v365, %v365
    %v383 = vunpack.c.l.b16 %v68
    %v384 = vunpack.c.h.b16 %v68
    %v385 = vunpack.c.l.b16 %v69
    %v386 = vunpack.c.h.b16 %v69
    %v387 = vunpack.c.l.b16 %v70
    %v388 = vunpack.c.h.b16 %v70
    %v389 = vunpack.c.l.b16 %v71
    %v390 = vunpack.c.h.b16 %v71
    %v391 = vunpack.c.l.b16 %v72
    %v392 = vunpack.c.h.b16 %v72
    %v393 = vunpack.c.l.b16 %v73
    %v394 = vunpack.c.h.b16 %v73
    %v395 = vunpack.c.l.b16 %v74
    %v396 = vunpack.c.h.b16 %v74
    %v397 = vunpack.c.l.b16 %v75
    %v398 = vunpack.c.h.b16 %v75
    %v399 = vunpack.c.l.b16 %v76
    %v400 = vunpack.c.h.b16 %v76
    %v401 = vunpack.c.l.b16 %v77
    %v402 = vunpack.c.h.b16 %v77
    %v403 = vunpack.c.l.b16 %v78
    %v404 = vunpack.c.h.b16 %v78
    %v405 = vunpack.c.l.b16 %v79
    %v406 = vunpack.c.h.b16 %v79
    %v407 = vunpack.c.l.b16 %v80
    %v408 = vunpack.c.h.b16 %v80
    %v409 = vunpack.c.l.b16 %v81
    %v410 = vunpack.c.h.b16 %v81
    %v411 = vunpack.c.l.b16 %v82
    %v412 = vunpack.c.h.b16 %v82
    %v413 = vunpack.c.l.b16 %v83
    %v414 = vunpack.c.h.b16 %v83
    %v415 = vpack.c.b16 %v387, %v383
    %v416 = vpack.c.b16 %v388, %v384
    %v417 = vpack.c.b16 %v389, %v385
    %v418 = vpack.c.b16 %v390, %v386
    %v419 = vpack.c.b16 %v395, %v391
    %v420 = vpack.c.b16 %v396, %v392
    %v421 = vpack.c.b16 %v397, %v393
    %v422 = vpack.c.b16 %v398, %v394
    %v423 = vpack.c.b16 %v403, %v399
    %v424 = vpack.c.b16 %v404, %v400
    %v425 = vpack.c.b16 %v405, %v401
    %v426 = vpack.c.b16 %v406, %v402
    %v427 = vpack.c.b16 %v411, %v407
    %v428 = vpack.c.b16 %v412, %v408
    %v429 = vpack.c.b16 %v413, %v409
    %v430 = vpack.c.b16 %v414, %v410
    %vm443 = vcmask 490496
    %v445 = vsel %vm443, %v366, 0
    %vm447 = vcmask 1045504
    %v449 = vsel %vm447, %v427, 0
    %v452 = vsel %vm447, %v428, 0
    %v455 = vsel %vm447, %v429, 0
    %v458 = vsel %vm447, %v430, 0
    %460 = vmatprep.subr.bf16.mxu0 %v416
    %461 = vmatpush1.bf16.msra.mxu0 %v415
    %462 = vmatprep.subr.bf16.mxu0 %v420
    %463 = vmatpush1.bf16.msra.mxu0 %v419
    %464 = vmatprep.subr.bf16.mxu0 %v424
    %465 = vmatpush1.bf16.msra.mxu0 %v423
    %466 = vmatprep.subr.bf16.mxu0 %v452
    %467 = vmatpush1.bf16.msra.mxu0 %v449
    %468 = vmatprep.subr.bf16.mxu0 0
    %469 = vmatpush1.bf16.msra.mxu0 0
    %470 = vmatprep.subr.bf16.mxu0 0
    %471 = vmatpush1.bf16.msra.mxu0 0
    %472 = vmatprep.subr.bf16.mxu0 0
    %473 = vmatpush1.bf16.msra.mxu0 0
    %474 = vmatprep.subr.bf16.mxu0 0
    %475 = vmatpush1.bf16.msra.mxu0 0
    %476 = vmatprep.subr.bf16.mxu0 0
    %477 = vmatpush1.bf16.msra.mxu0 0
    %478 = vmatprep.subr.bf16.mxu0 0
    %479 = vmatpush1.bf16.msra.mxu0 0
    %480 = vmatprep.subr.bf16.mxu0 0
    %481 = vmatpush1.bf16.msra.mxu0 0
    %482 = vmatprep.subr.bf16.mxu0 0
    %483 = vmatpush1.bf16.msra.mxu0 0
    %484 = vmatprep.subr.bf16.mxu0 0
    %485 = vmatpush1.bf16.msra.mxu0 0
    %486 = vmatprep.subr.bf16.mxu0 0
    %487 = vmatpush1.bf16.msra.mxu0 0
    %488 = vmatprep.subr.bf16.mxu0 0
    %489 = vmatpush1.bf16.msra.mxu0 0
    %490 = vmatprep.subr.bf16.mxu0 0
    %491 = vmatpush1.bf16.msra.mxu0 0
    %492 = vmatprep.mubr.bf16.mxu0 0
    %493 = vmatmul.mubr.bf16.gmra.mrb[0].mxu0 %v445
    %v494 = vpop.f32.mrb[0].mxu0
    %v495 = vadd.f32 %v312, %v494
    %v496 = vpop.f32.mrb[0].mxu0
    %v497 = vadd.f32 %v314, %v496
    %v498 = vpop.f32.mrb[0].mxu0
    %v499 = vpop.f32.mrb[0].mxu0
    %500 = vdwg.mxu0
    %501 = vmatprep.subr.bf16.mxu0 %v418
    %502 = vmatpush1.bf16.msra.mxu0 %v417
    %503 = vmatprep.subr.bf16.mxu0 %v422
    %504 = vmatpush1.bf16.msra.mxu0 %v421
    %505 = vmatprep.subr.bf16.mxu0 %v426
    %506 = vmatpush1.bf16.msra.mxu0 %v425
    %507 = vmatprep.subr.bf16.mxu0 %v458
    %508 = vmatpush1.bf16.msra.mxu0 %v455
    %509 = vmatprep.subr.bf16.mxu0 0
    %510 = vmatpush1.bf16.msra.mxu0 0
    %511 = vmatprep.subr.bf16.mxu0 0
    %512 = vmatpush1.bf16.msra.mxu0 0
    %513 = vmatprep.subr.bf16.mxu0 0
    %514 = vmatpush1.bf16.msra.mxu0 0
    %515 = vmatprep.subr.bf16.mxu0 0
    %516 = vmatpush1.bf16.msra.mxu0 0
    %517 = vmatprep.subr.bf16.mxu0 0
    %518 = vmatpush1.bf16.msra.mxu0 0
    %519 = vmatprep.subr.bf16.mxu0 0
    %520 = vmatpush1.bf16.msra.mxu0 0
    %521 = vmatprep.subr.bf16.mxu0 0
    %522 = vmatpush1.bf16.msra.mxu0 0
    %523 = vmatprep.subr.bf16.mxu0 0
    %524 = vmatpush1.bf16.msra.mxu0 0
    %525 = vmatprep.subr.bf16.mxu0 0
    %526 = vmatpush1.bf16.msra.mxu0 0
    %527 = vmatprep.subr.bf16.mxu0 0
    %528 = vmatpush1.bf16.msra.mxu0 0
    %529 = vmatprep.subr.bf16.mxu0 0
    %530 = vmatpush1.bf16.msra.mxu0 0
    %531 = vmatprep.subr.bf16.mxu0 0
    %532 = vmatpush1.bf16.msra.mxu0 0
    %533 = vmatprep.mubr.bf16.mxu0 0
    %534 = vmatmul.mubr.bf16.gmra.mrb[0].mxu0 %v445
    %v535 = vpop.f32.mrb[0].mxu0
    %v536 = vadd.f32 %v353, %v535
    %v537 = vpop.f32.mrb[0].mxu0
    %v538 = vadd.f32 %v355, %v537
    %v539 = vpop.f32.mrb[0].mxu0
    %v540 = vpop.f32.mrb[0].mxu0
    %541 = vdwg.mxu0
    %v542 = vld [vmem:[%s5] sm:$0xf]
    %v544 = vlaneseq
    %v545 = vshrl.u32 %v544, 7
    %v546 = vsub.s32 0, %v545
    %v547 = vrot.slane %v542, %v546
    %v548 = vlaneseq
    %v549 = vshrl.u32 %v548, 7
    %v550 = vsub.s32 1, %v549
    %v551 = vrot.slane %v542, %v550
    %v552 = vlaneseq
    %v553 = vshrl.u32 %v552, 7
    %v554 = vsub.s32 2, %v553
    %v555 = vrot.slane %v542, %v554
    %v556 = vlaneseq
    %v557 = vshrl.u32 %v556, 7
    %v558 = vsub.s32 3, %v557
    %v559 = vrot.slane %v542, %v558
    %v564 = vadd.f32 %v495, %v547
    %v565 = vadd.f32 %v497, %v551
    %v566 = vadd.f32 %v536, %v555
    %v567 = vadd.f32 %v538, %v559
    %v568 = vxor.u32 %v564, 2147483648
    %v569 = vmul.f32 %v568, 1.442695
    %v570 = vpow.pop %v569
    %v571 = vadd.f32 %v570, 1.0
    %v572 = vrcp.pop %v571
    %v573 = vmul.f32 1.0, %v572
    %v574 = vxor.u32 %v565, 2147483648
    %v575 = vmul.f32 %v574, 1.442695
    %v576 = vpow.pop %v575
    %v577 = vadd.f32 %v576, 1.0
    %v578 = vrcp.pop %v577
    %v579 = vmul.f32 1.0, %v578
    %v580 = vtanh.pop %v566
    %v581 = vxor.u32 %v567, 2147483648
    %v582 = vmul.f32 %v581, 1.442695
    %v583 = vpow.pop %v582
    %v584 = vadd.f32 %v583, 1.0
    %v585 = vrcp.pop %v584
    %v586 = vmul.f32 1.0, %v585
    %v587 = vmul.f32 %v579, %v63
    %v588 = vmul.f32 %v573, %v580
    %v589 = vadd.f32 %v587, %v588
    %v590 = vtanh.pop %v589
    %v591 = vmul.f32 %v586, %v590
    %592 = vst [vmem:[%s9] sm:$0x3] %v591
    %593 = vst [vmem:[%s10] sm:$0x3] %v589
    %v594 = vld [vmem:[%s6] sm:$0x1]
    %v595 = vlaneseq
    %v596 = vshrl.u32 %v595, 7
    %v597 = vsub.s32 0, %v596
    %v598 = vrot.slane %v594, %v597
    %v599 = vmul.f32 %v591, %v598
    %vm600 = vcmask 1041408
    %v601 = vsel %vm600, %v599, 0.0
    %602 = vadd.xlane.f32.xlu0 %v601
    %v603 = vpop.xlane.xlu0 %602
    %v604 = vld [vmem:[%s7] sm:$0x1]
    %v606 = vlaneseq
    %v607 = vshrl.u32 %v606, 7
    %v608 = vsub.s32 0, %v607
    %v609 = vrot.slane %v604, %v608
    %v611 = vadd.f32 %v603, %v609
    %v612 = vld [vmem:[%s6 + $0x1] sm:$0x1]
    %v613 = vlaneseq
    %v614 = vshrl.u32 %v613, 7
    %v615 = vsub.s32 0, %v614
    %v616 = vrot.slane %v612, %v615
    %v617 = vmul.f32 %v591, %v616
    %v618 = vsel %vm600, %v617, 0.0
    %619 = vadd.xlane.f32.xlu0 %v618
    %v620 = vpop.xlane.xlu0 %619
    %v621 = vadd.f32 %v620, %v609
    %623 = vrot.lane.b32.xlu0 %v621, 127
    %v624 = vpop.permute.xlu0 %623
    %v626 = vmax.f32 %v611, %v624
    %v627 = vsub.f32 %v611, %v626
    %629 = vrot.lane.b32.xlu0 %v626, 1
    %v630 = vpop.permute.xlu0 %629
    %v632 = vsub.f32 %v621, %v630
    %v633 = vmul.f32 %v627, 1.442695
    %v634 = vpow.pop %v633
    %v635 = vmul.f32 %v632, 1.442695
    %v636 = vpow.pop %v635
    %638 = vrot.lane.b32.xlu0 %v636, 127
    %v639 = vpop.permute.xlu0 %638
    %v641 = vadd.f32 %v634, %v639
    %v642 = vlog2.pop %v641
    %v643 = vmul.f32 %v642, 0.6931472
    %v644 = vsub.f32 %v627, %v643
    %646 = vrot.lane.b32.xlu0 %v643, 1
    %v647 = vpop.permute.xlu0 %646
    %v649 = vsub.f32 %v632, %v647
    %vm650 = vcmask 7168
    %v651 = vsel %vm650, %v644, %v649
    %vm652 = vcmask 9216
    %653 = vst.msk [vmem:[#allocation7] sm:$0x3] %vm652, %v651
    // Predicated region
    $region42: #{lstm_forward.1} parent=1 // pred_check
      _
    $region43: #{lstm_forward.1} parent=1 // pred_check_branch
      %655 = sbr.rel (0) target = $region45
    $region44: #{lstm_forward.1} parent=1 // pred_region
      %s657 = ssub.s32 32, 32
      %658 = vsyncadd [#allocation4], %s657
      %s660 = sshll.u32 [#allocation7], 4
      %s661 = int_to_ptr.vmem [resolvable:$true] %s660
      %663 = dma.vmem_to_hbm [thread:$0]  %s661, 32, %s8, [#allocation4]
    $region45: #{lstm_forward.1} parent=1 // pred_fallthru
      _
    // Predicated region
    $region46: #{lstm_forward.1} parent=1 // pred_check
      _
    $region47: #{lstm_forward.1} parent=1 // pred_check_branch
      %665 = sbr.rel (0) target = $region49
    $region48: #{lstm_forward.1} parent=1 // pred_region
      _
    $region49: #{lstm_forward.1} parent=1 // pred_fallthru
      _
    // Predicated region
    $region50: #{lstm_forward.1} parent=1 // pred_check
      _
    $region51: #{lstm_forward.1} parent=1 // pred_check_branch
      %667 = sbr.rel (0) target = $region53
    $region52: #{lstm_forward.1} parent=1 // pred_region
      _
    $region53: #{lstm_forward.1} parent=1 // pred_fallthru
      _
    // Predicated region
    $region54: #{lstm_forward.1} parent=1 // pred_check
      _
    $region55: #{lstm_forward.1} parent=1 // pred_check_branch
      %669 = sbr.rel (0) target = $region57
    $region56: #{lstm_forward.1} parent=1 // pred_region
      %670 = dma.done [#allocation4], 32
    $region57: #{lstm_forward.1} parent=1 // pred_fallthru
      _
    // Predicated region
    $region58: #{lstm_forward.1} parent=1 // pred_check
      _
    $region59: #{lstm_forward.1} parent=1 // pred_check_branch
      %672 = sbr.rel (0) target = $region61
    $region60: #{lstm_forward.1} parent=1 // pred_region
      _
    $region61: #{lstm_forward.1} parent=1 // pred_fallthru
      _
    // Predicated region
    $region62: #{lstm_forward.1} parent=1 // pred_check
      _
    $region63: #{lstm_forward.1} parent=1 // pred_check_branch
      %674 = sbr.rel (0) target = $region65
    $region64: #{lstm_forward.1} parent=1 // pred_region
      _
    $region65: #{lstm_forward.1} parent=1 // pred_fallthru
      _
    %675 = vsyncpa [#allocation3], 1
    %676 = vsyncpa [#allocation6], 1
    %677 = vsyncpa [#allocation4], 1

</llo_original>
